<compile_context>
chip_gen: v5e
topology: v5e:2x2
jax: 0.10.0
libtpu: 0.0.40
codegen_flags: <defaults>
</compile_context>

<pallas_src>
import functools

import jax
import jax.numpy as jnp
from jax.experimental import pallas as pl
from jax.experimental.pallas import tpu as pltpu

_SUBLANE = 8
_VMEM_BUDGET_BYTES = 40 * 1024 * 1024  # fits v7x's 64 MiB physical VMEM


def _round_up(x, m):
    return ((x + m - 1) // m) * m


def _linear_policy_kernel(x_ref, w_ref, b_ref, mean_ref):
    # MXU matmul with f32 accumulation; bias add on the VPU.
    mean_ref[...] = (
        jnp.dot(x_ref[...], w_ref[...], preferred_element_type=jnp.float32)
        + b_ref[...]
    ).astype(mean_ref.dtype)


@functools.partial(
    jax.jit, static_argnames=("block_b", "use_bf16_matmul", "force_pallas"))
def linear_policy_forward(obs, w, b, log_std, *, block_b=1024,
                          use_bf16_matmul=False, force_pallas=False):
    """Returns (mean, std) of the Normal distribution produced by LinearPolicy.

    obs:     (B, obs_dim) float32
    w:       (obs_dim, act_dim)   -- transpose of torch's nn.Linear weight
    b:       (act_dim,)
    log_std: (act_dim,)

    mean: (B, act_dim) float32
    std:  (act_dim,)   float32  (batch-independent; broadcasts in Normal)
    """
    B, obs_dim = obs.shape
    act_dim = w.shape[1]

    # std = exp(clamp(log_std, -20, 2)) is batch-independent: computed once,
    # never broadcast/materialized to (B, act_dim).
    std = jnp.exp(jnp.clip(log_std, -20.0, 2.0))

    if B == 0:
        return jnp.zeros((0, act_dim), jnp.float32), std

    # Small-shape fast path: pallas_call launch cost dominates tiny problems.
    if not force_pallas and B * max(obs_dim, act_dim) <= 32 * 1024:
        mean = jnp.dot(obs.astype(jnp.float32), w.astype(jnp.float32),
                       preferred_element_type=jnp.float32) + b
        return mean, std

    # Batch tile: multiple of 8 sublanes; cap at round_up(cdiv(B, 2), 8) so the
    # "parallel" grid has at least 2 steps (both v7x TensorCores busy).
    blk = min(block_b, _round_up(pl.cdiv(B, 2), _SUBLANE))
    blk = max(_SUBLANE, (blk // _SUBLANE) * _SUBLANE)

    itemsize_in = 2 if use_bf16_matmul else 4

    def vmem_bytes(bb):
        # double-buffered obs tile + resident weight/bias + double-buffered out
        return (2 * itemsize_in * (bb * obs_dim + obs_dim * act_dim + act_dim)
                + 2 * 4 * bb * act_dim)

    while blk > _SUBLANE and vmem_bytes(blk) > _VMEM_BUDGET_BYTES:
        blk = max(_SUBLANE, ((blk // 2) // _SUBLANE) * _SUBLANE)

    if use_bf16_matmul:
        obs_in = obs.astype(jnp.bfloat16)
        w_in = w.astype(jnp.bfloat16)
    else:
        obs_in = obs.astype(jnp.float32)
        w_in = w.astype(jnp.float32)
    b_in = b.reshape(1, act_dim).astype(jnp.float32)

    grid = (pl.cdiv(B, blk),)  # no batch padding; ragged tail handled by Pallas

    mean = pl.pallas_call(
        _linear_policy_kernel,
        out_shape=jax.ShapeDtypeStruct((B, act_dim), jnp.float32),
        grid_spec=pl.GridSpec(
            grid=grid,
            in_specs=[
                # obs batch tile; feature dim = full array dim (no padding)
                pl.BlockSpec((blk, obs_dim), lambda i: (i, 0)),
                # weight + bias: constant block index -> VMEM-resident
                pl.BlockSpec((obs_dim, act_dim), lambda i: (0, 0)),
                pl.BlockSpec((1, act_dim), lambda i: (0, 0)),
            ],
            out_specs=pl.BlockSpec((blk, act_dim), lambda i: (i, 0)),
        ),
        compiler_params=pltpu.CompilerParams(
            dimension_semantics=("parallel",),
            vmem_limit_bytes=int(max(vmem_bytes(blk) + (4 << 20), 32 << 20)),
        ),
    )(obs_in, w_in, b_in)

    return mean, std


def init_params(key, obs_dim, act_dim):
    """Deterministic synthetic parameters matching LinearPolicy's shapes."""
    bound = 1.0 / jnp.sqrt(obs_dim)
    kw, kb = jax.random.split(key)
    w = jax.random.uniform(kw, (obs_dim, act_dim), jnp.float32, -bound, bound)
    b = jax.random.uniform(kb, (act_dim,), jnp.float32, -bound, bound)
    log_std = jnp.zeros((act_dim,), jnp.float32)  # nn.Parameter(torch.zeros(act_dim))
    return w, b, log_std


def reference_forward(obs, w, b, log_std):
    mean = obs @ w + b
    std = jnp.exp(jnp.clip(log_std, -20.0, 2.0))
    return mean, std


if __name__ == "__main__":
    obs_dim, act_dim, batch = 16, 4, 8

    key = jax.random.PRNGKey(0)
    k_obs, k_par = jax.random.split(key)
    obs = jax.random.normal(k_obs, (batch, obs_dim), jnp.float32)
    w, b, log_std = init_params(k_par, obs_dim, act_dim)

    ref_mean, ref_std = reference_forward(obs, w, b, log_std)

    # Exercise the Pallas kernel explicitly (force past the tiny-shape fast path).
    mean, std = linear_policy_forward(obs, w, b, log_std, force_pallas=True)
    jax.block_until_ready((mean, std))
    assert mean.shape == (batch, act_dim) and std.shape == (act_dim,)
    assert jnp.allclose(mean, ref_mean, atol=1e-5, rtol=1e-5)
    assert jnp.allclose(std, ref_std, atol=1e-6, rtol=1e-6)

    # Default dispatch (small-shape XLA fast path) must agree too.
    mean_fp, std_fp = linear_policy_forward(obs, w, b, log_std)
    jax.block_until_ready((mean_fp, std_fp))
    assert jnp.allclose(mean_fp, ref_mean, atol=1e-5, rtol=1e-5)
    assert jnp.allclose(std_fp, ref_std, atol=1e-6, rtol=1e-6)

    print("KERNEL_OK")
</pallas_src>

<mosaic_0001>
module attributes {stable_mosaic.version = 11 : i64} {
  func.func @_linear_policy_kernel(%arg0: i32, %arg1: memref<8x16xf32, #tpu.memory_space<vmem>>, %arg2: memref<16x4xf32, #tpu.memory_space<vmem>>, %arg3: memref<1x4xf32, #tpu.memory_space<vmem>>, %arg4: memref<8x4xf32, #tpu.memory_space<vmem>>) attributes {dimension_semantics = [#tpu.dimension_semantics<parallel>], iteration_bounds = array<i64: 1>, scalar_prefetch = 0 : i64, scratch_operands = 0 : i64, tpu.core_type = #tpu.core_type<tc>, window_params = [{transform_indices = @transform_0, window_bounds = array<i64: 8, 16>}, {pipeline_mode = #tpu.pipeline_mode<synchronous>, transform_indices = @transform_1, window_bounds = array<i64: 16, 4>}, {pipeline_mode = #tpu.pipeline_mode<synchronous>, transform_indices = @transform_2, window_bounds = array<i64: 1, 4>}, {transform_indices = @transform_3, window_bounds = array<i64: 8, 4>}]} {
    %c0 = arith.constant 0 : index
    %c0_0 = arith.constant 0 : index
    %0 = vector.load %arg1[%c0, %c0_0] : memref<8x16xf32, #tpu.memory_space<vmem>>, vector<8x16xf32>
    %c0_1 = arith.constant 0 : index
    %c0_2 = arith.constant 0 : index
    %1 = vector.load %arg2[%c0_1, %c0_2] : memref<16x4xf32, #tpu.memory_space<vmem>>, vector<16x4xf32>
    %cst = arith.constant dense<0.000000e+00> : vector<8x4xf32>
    %2 = tpu.matmul %0, %1, %cst {dimension_numbers = #tpu.dot_dimension_numbers<[1], [0], [0], [1], [0, 0, 1, 1], [], []>} : vector<8x16xf32>, vector<16x4xf32>, vector<8x4xf32> -> vector<8x4xf32>
    %c0_3 = arith.constant 0 : index
    %c0_4 = arith.constant 0 : index
    %3 = vector.load %arg3[%c0_3, %c0_4] : memref<1x4xf32, #tpu.memory_space<vmem>>, vector<1x4xf32>
    %4 = vector.broadcast %3 : vector<1x4xf32> to vector<8x4xf32>
    %5 = arith.addf %2, %4 : vector<8x4xf32>
    %c0_5 = arith.constant 0 : index
    %c0_6 = arith.constant 0 : index
    %6 = vector.load %arg4[%c0_5, %c0_6] : memref<8x4xf32, #tpu.memory_space<vmem>>, vector<8x4xf32>
    tpu.vector_store %arg4[%c0_5, %c0_6], %5 {strides = array<i32>} : memref<8x4xf32, #tpu.memory_space<vmem>>, vector<8x4xf32>,
    return
  }
  func.func @transform_0(%arg0: i32) -> (i32, i32) {
    %c0_i32 = arith.constant 0 : i32
    %c0_i32_0 = arith.constant 0 : i32
    return %arg0, %c0_i32 : i32, i32
  }
  func.func @transform_1(%arg0: i32) -> (i32, i32) {
    %c0_i32 = arith.constant 0 : i32
    %c0_i32_0 = arith.constant 0 : i32
    %c0_i32_1 = arith.constant 0 : i32
    return %c0_i32, %c0_i32_0 : i32, i32
  }
  func.func @transform_2(%arg0: i32) -> (i32, i32) {
    %c0_i32 = arith.constant 0 : i32
    %c0_i32_0 = arith.constant 0 : i32
    %c0_i32_1 = arith.constant 0 : i32
    return %c0_i32, %c0_i32_0 : i32, i32
  }
  func.func @transform_3(%arg0: i32) -> (i32, i32) {
    %c0_i32 = arith.constant 0 : i32
    %c0_i32_0 = arith.constant 0 : i32
    return %arg0, %c0_i32 : i32, i32
  }
}

</mosaic_0001>

<llo_original>
// kernel: linear_policy_forward.1
$region0: #{linear_policy_forward.1}
  #allocation0 [shape = 'u32[]', space=smem, size = 0x4, offset = 0x4, fixed_abs, tag = 'smem constant byte address 0x4 - core index']
  #allocation1 [shape = 'u32[72,128]{1,0:T(1,128)}', space=vmem, size = 0x9000, scoped, tag = 'internal scratch']
  %s0 = inlined_call_operand.vmem [shape: f32[8,16], index: 0, kind: input, shape index: {}]
  %s1 = inlined_call_operand.vmem [shape: f32[16,4], index: 1, kind: input, shape index: {}]
  %s2 = inlined_call_operand.vmem [shape: f32[1,4], index: 2, kind: input, shape index: {}]
  %s3 = inlined_call_operand.vmem [shape: f32[8,4], index: 3, kind: output, shape index: {}]
  %s4 = sld [smem:[#allocation0]]
  $region22: #{linear_policy_forward.1} parent=0
    _
  %s6 = ssub.s32 1, %s4
  %s7 = scalar_select 0, %s6, %s4
  // Predicated region
  $region2: #{linear_policy_forward.1} parent=0 // pred_check
    _
  $region3: #{linear_policy_forward.1} parent=0 // pred_check_branch
    %9 = sbr.rel (0) target = $region5
  $region4: #{linear_policy_forward.1} parent=0 // pred_region
    _
  $region5: #{linear_policy_forward.1} parent=0 // pred_fallthru
    _
  // Predicated region
  $region6: #{linear_policy_forward.1} parent=0 // pred_check
    _
  $region7: #{linear_policy_forward.1} parent=0 // pred_check_branch
    %11 = sbr.rel (0) target = $region9
  $region8: #{linear_policy_forward.1} parent=0 // pred_region
    _
  $region9: #{linear_policy_forward.1} parent=0 // pred_fallthru
    _
  // Predicated region
  $region10: #{linear_policy_forward.1} parent=0 // pred_check
    _
  $region11: #{linear_policy_forward.1} parent=0 // pred_check_branch
    %13 = sbr.rel (0) target = $region13
  $region12: #{linear_policy_forward.1} parent=0 // pred_region
    _
  $region13: #{linear_policy_forward.1} parent=0 // pred_fallthru
    _
  %v14 = vld [vmem:[%s0] sm:$0xff]
  %v15 = vld [vmem:[%s1] sm:$0xff]
  %v16 = vld [vmem:[%s1 + $0x8] sm:$0xff]
  %v17 = vld [vmem:[%s2] sm:$0x1]
  %v19 = vperm.slane %v17, 0
  %vm21 = vcmask 130048
  %v23 = vsel %vm21, %v14, 0
  %25 = vmatpush.msra.mxu0 0.0
  %26 = vmatpush.msra.mxu0 0.0
  %27 = vmatpush.msra.mxu0 0.0
  %28 = vmatpush.msra.mxu0 0.0
  %29 = vmatpush.msra.mxu0 0.0
  %30 = vmatpush.msra.mxu0 0.0
  %31 = vmatpush.msra.mxu0 0.0
  %32 = vmatpush.msra.mxu0 0.0
  %33 = vmatpush.msra.mxu0 0.0
  %34 = vmatpush.msra.mxu0 0.0
  %35 = vmatpush.msra.mxu0 0.0
  %36 = vmatpush.msra.mxu0 0.0
  %37 = vmatpush.msra.mxu0 0.0
  %38 = vmatpush.msra.mxu0 0.0
  %39 = vmatpush.msra.mxu0 %v16
  %40 = vmatpush.msra.mxu0 %v15
  %41 = vmatmul.f32.gmra.mxu0 %v23
  %v42 = vpop.f32.mrf.mxu0
  %v43 = vadd.f32 %v19, %v42
  %44 = vdwg.mxu0
  %vm45 = vcmask 31744
  %46 = vst.msk [vmem:[%s3] sm:$0xff] %vm45, %v43
  // Predicated region
  $region14: #{linear_policy_forward.1} parent=0 // pred_check
    _
  $region15: #{linear_policy_forward.1} parent=0 // pred_check_branch
    %48 = sbr.rel (0) target = $region17
  $region16: #{linear_policy_forward.1} parent=0 // pred_region
    _
  $region17: #{linear_policy_forward.1} parent=0 // pred_fallthru
    _
  // Predicated region
  $region18: #{linear_policy_forward.1} parent=0 // pred_check
    _
  $region19: #{linear_policy_forward.1} parent=0 // pred_check_branch
    %50 = sbr.rel (0) target = $region21
  $region20: #{linear_policy_forward.1} parent=0 // pred_region
    _
  $region21: #{linear_policy_forward.1} parent=0 // pred_fallthru
    _

</llo_original>
